<compile_context>
chip_gen: v5e
topology: v5e:2x2
jax: 0.10.0
libtpu: 0.0.40
codegen_flags: <defaults>
</compile_context>

<pallas_src>
import functools

import jax
import jax.numpy as jnp
from jax.experimental import pallas as pl
from jax.experimental.pallas import tpu as pltpu

_PREC = jax.lax.Precision.HIGHEST  # exact f32 matmuls; negligible cost at these sizes


# ---------------------------------------------------------------------------
# Layout helpers (host-side packing)
# ---------------------------------------------------------------------------
def _round_up(x, m):
    return (x + m - 1) // m * m


def _act_width(in_dim, H):
    # activation slab lane width = rows of W_A; padded to a multiple of 128 lanes
    return _round_up(H + in_dim + 1, 128)


def pack_params(p):
    """Pack all 8 parameter arrays into ONE (ACT_W + H + 8, 4H) f32 slab.

    Row layout (H=32, in_dim=48 -> (168, 128)):
      rows 0:H            h-path rows of W_A : cols H:4H = Whh^T (gates r|z|n)
      rows H:H+in_dim     inp rows of W_A    : cols 0:H  = W1^T
      row  H+in_dim       bias row of W_A    : cols 0:H = b1, cols H:4H = bhh
      rows ..:ACT_W       zero padding
      rows ACT_W:ACT_W+H  W_B = Wih^T (cols 0:3H), rest 0
      row  ACT_W+H        bih (cols 0:3H)
      row  ACT_W+H+1      fc3 weight row (cols 0:H)
      row  ACT_W+H+2      fc3 bias (broadcast)
    """
    f32 = jnp.float32
    H, in_dim = p["w1"].shape[0], p["w1"].shape[1]
    GATE_W = 4 * H
    ACT_W = _act_width(in_dim, H)
    rows = ACT_W + H + 8

    P = jnp.zeros((rows, GATE_W), f32)
    P = P.at[0:H, H:4 * H].set(p["whh"].T.astype(f32))               # gh weights
    P = P.at[H:H + in_dim, 0:H].set(p["w1"].T.astype(f32))           # fc1 weights
    P = P.at[H + in_dim, 0:H].set(p["b1"][0].astype(f32))            # fc1 bias
    P = P.at[H + in_dim, H:4 * H].set(p["bhh"][0].astype(f32))       # gh bias
    P = P.at[ACT_W:ACT_W + H, 0:3 * H].set(p["wih"].T.astype(f32))   # gx weights
    P = P.at[ACT_W + H, 0:3 * H].set(p["bih"][0].astype(f32))        # gx bias
    P = P.at[ACT_W + H + 1, 0:H].set(p["w3"][0].astype(f32))         # fc3 weight
    P = P.at[ACT_W + H + 2, :].set(jnp.full((GATE_W,), p["b3"][0, 0], f32))  # fc3 bias
    return P


def pack_act(inputs, h_in):
    """Activation slab for the single-step kernel: [h | inp | 1 | 0-pad] (B, ACT_W)."""
    B, in_dim = inputs.shape
    H = h_in.shape[1]
    aw = _act_width(in_dim, H)
    ones = jnp.ones((B, 1), jnp.float32)
    act = jnp.concatenate([h_in.astype(jnp.float32), inputs.astype(jnp.float32), ones], -1)
    return jnp.pad(act, ((0, 0), (0, aw - act.shape[-1])))


def pack_steps(inputs_seq, H):
    """Per-step input slab for the sequence kernel: [inp | 1 | 0-pad] (T, B, ACT_W - H)."""
    T, B, in_dim = inputs_seq.shape
    step_w = _act_width(in_dim, H) - H
    ones = jnp.ones((T, B, 1), jnp.float32)
    steps = jnp.concatenate([inputs_seq.astype(jnp.float32), ones], -1)
    return jnp.pad(steps, ((0, 0), (0, 0), (0, step_w - steps.shape[-1])))


# ---------------------------------------------------------------------------
# Kernels
# ---------------------------------------------------------------------------
def _gru_value_head(g1, h, p_ref, aw, H):
    """Shared tail: g1 = [x_pre | gh_r | gh_z | gh_n]  ->  (h_out, v)."""
    x = jnp.maximum(g1[:, 0:H], 0.0)                                  # relu(fc1)
    gx = jnp.dot(x, p_ref[aw:aw + H, :], precision=_PREC,
                 preferred_element_type=jnp.float32) + p_ref[aw + H:aw + H + 1, :]
    r = jax.nn.sigmoid(gx[:, 0:H] + g1[:, H:2 * H])
    z = jax.nn.sigmoid(gx[:, H:2 * H] + g1[:, 2 * H:3 * H])
    n = jnp.tanh(gx[:, 2 * H:3 * H] + r * g1[:, 3 * H:4 * H])
    h_out = (1.0 - z) * n + z * h
    # fc3 (out_features = 1) on the VPU/XLU instead of a width-1 MXU matmul.
    w3 = p_ref[aw + H + 1:aw + H + 2, 0:H]
    b3 = p_ref[aw + H + 2:aw + H + 3, 0:1]
    v = jnp.sum(h_out * w3, axis=-1, keepdims=True) + b3
    return h_out, v


def critic_step_kernel(act_ref, p_ref, out_ref, *, hidden_dim):
    """Single step: act = [h | inp | 1 | 0], out = [h_out | v | 0] (lane-dense 4H slab)."""
    H = hidden_dim
    act = act_ref[...]
    aw = act.shape[-1]
    h = act[:, 0:H]
    g1 = jnp.dot(act, p_ref[0:aw, :], precision=_PREC,
                 preferred_element_type=jnp.float32)
    h_out, v = _gru_value_head(g1, h, p_ref, aw, H)
    out_ref[...] = jnp.zeros_like(out_ref)
    out_ref[:, 0:H] = h_out
    out_ref[:, H:H + 1] = v


def critic_seq_kernel(h0_ref, step_ref, p_ref, out_ref, h_scr, *, hidden_dim):
    """T recurrent steps inside one pallas_call; h carried in VMEM scratch."""
    H = hidden_dim

    @pl.when(pl.program_id(0) == 0)
    def _init():
        h_scr[...] = h0_ref[...]

    h = h_scr[...]
    step = step_ref[...]                      # (B, ACT_W - H): [inp | 1 | 0-pad]
    aw = H + step.shape[-1]
    g1 = (jnp.dot(h, p_ref[0:H, :], precision=_PREC,
                  preferred_element_type=jnp.float32)
          + jnp.dot(step, p_ref[H:aw, :], precision=_PREC,
                    preferred_element_type=jnp.float32))
    h_out, v = _gru_value_head(g1, h, p_ref, aw, H)

    h_scr[...] = h_out
    out_ref[...] = jnp.zeros_like(out_ref)
    out_ref[:, 0:H] = h_out
    out_ref[:, H:H + 1] = v


# ---------------------------------------------------------------------------
# Wrappers
# ---------------------------------------------------------------------------
def critic_forward(inputs, h_in, p_slab):
    """Matches Critic.forward(inputs, h_in) -> (v, h_out). Single block, fully VMEM-resident."""
    B = inputs.shape[0]
    H = h_in.shape[1]
    W = 4 * H
    act = pack_act(inputs, h_in)
    vmem = pl.BlockSpec(memory_space=pltpu.MemorySpace.VMEM)
    out = pl.pallas_call(
        functools.partial(critic_step_kernel, hidden_dim=H),
        out_shape=jax.ShapeDtypeStruct((B, W), jnp.float32),
        in_specs=[vmem, vmem],
        out_specs=vmem,
    )(act, p_slab)
    return out[:, H:H + 1], out[:, 0:H]


def critic_forward_seq(inputs_seq, h0, p_slab):
    """Run the GRU critic over a whole sequence inside one pallas_call.

    Returns (v_seq (T,B,1), h_seq (T,B,H)); h_seq[-1] is the final hidden state.
    """
    T, B, _ = inputs_seq.shape
    H = h0.shape[1]
    W = 4 * H
    steps = pack_steps(inputs_seq, H)
    step_w = steps.shape[-1]

    grid_spec = pltpu.PrefetchScalarGridSpec(
        num_scalar_prefetch=0,
        grid=(T,),
        in_specs=[
            pl.BlockSpec((B, H), lambda t: (0, 0)),                # h0: resident
            pl.BlockSpec((None, B, step_w), lambda t: (t, 0, 0)),  # inputs: streamed per step
            pl.BlockSpec(p_slab.shape, lambda t: (0, 0)),          # weights: DMA'd once
        ],
        out_specs=pl.BlockSpec((None, B, W), lambda t: (t, 0, 0)),
        scratch_shapes=[pltpu.VMEM((B, H), jnp.float32)],          # carried hidden state
    )
    out = pl.pallas_call(
        functools.partial(critic_seq_kernel, hidden_dim=H),
        out_shape=jax.ShapeDtypeStruct((T, B, W), jnp.float32),
        grid_spec=grid_spec,
        compiler_params=pltpu.CompilerParams(dimension_semantics=("arbitrary",)),
    )(h0.astype(jnp.float32), steps, p_slab)
    return out[:, :, H:H + 1], out[:, :, 0:H]


# ---------------------------------------------------------------------------
# Reference + parameter init
# ---------------------------------------------------------------------------
def init_params(key, critic_input_dim, hidden_dim):
    """Deterministic synthetic parameters matching the PyTorch module's shapes."""
    ks = jax.random.split(key, 8)
    s = 0.1
    return {
        "w1": s * jax.random.normal(ks[0], (hidden_dim, critic_input_dim), jnp.float32),
        "b1": s * jax.random.normal(ks[1], (1, hidden_dim), jnp.float32),
        "wih": s * jax.random.normal(ks[2], (3 * hidden_dim, hidden_dim), jnp.float32),
        "bih": s * jax.random.normal(ks[3], (1, 3 * hidden_dim), jnp.float32),
        "whh": s * jax.random.normal(ks[4], (3 * hidden_dim, hidden_dim), jnp.float32),
        "bhh": s * jax.random.normal(ks[5], (1, 3 * hidden_dim), jnp.float32),
        "w3": s * jax.random.normal(ks[6], (1, hidden_dim), jnp.float32),
        "b3": s * jax.random.normal(ks[7], (1, 1), jnp.float32),
    }


def _mm(a, b):
    return jnp.dot(a, b, precision=_PREC)


def critic_reference(inputs, h_in, p):
    """Pure-JAX reference of the PyTorch forward (unpacked params, PyTorch gate order r,z,n)."""
    x = jnp.maximum(_mm(inputs, p["w1"].T) + p["b1"], 0.0)
    gx = _mm(x, p["wih"].T) + p["bih"]
    gh = _mm(h_in, p["whh"].T) + p["bhh"]
    H = h_in.shape[1]
    r = jax.nn.sigmoid(gx[:, :H] + gh[:, :H])
    z = jax.nn.sigmoid(gx[:, H:2 * H] + gh[:, H:2 * H])
    n = jnp.tanh(gx[:, 2 * H:] + r * gh[:, 2 * H:])
    h_out = (1.0 - z) * n + z * h_in
    v = _mm(h_out, p["w3"].T) + p["b3"]
    return v, h_out


# ---------------------------------------------------------------------------
# Main
# ---------------------------------------------------------------------------
if __name__ == "__main__":
    batch = 8
    critic_input_dim = 48
    hidden_dim = 32
    seq_len = 16

    key = jax.random.PRNGKey(0)
    k_in, k_h, k_p, k_seq = jax.random.split(key, 4)

    inputs = jax.random.normal(k_in, (batch, critic_input_dim), jnp.float32)
    h_in = jax.random.normal(k_h, (batch, hidden_dim), jnp.float32)
    params = init_params(k_p, critic_input_dim, hidden_dim)
    p_slab = pack_params(params)

    # --- single step (exact Critic.forward semantics) ---
    v, h_out = critic_forward(inputs, h_in, p_slab)
    jax.block_until_ready((v, h_out))
    v_ref, h_ref = critic_reference(inputs, h_in, params)
    assert v.shape == (batch, 1) and h_out.shape == (batch, hidden_dim)
    assert jnp.allclose(v, v_ref, atol=1e-4), "single-step value mismatch vs reference"
    assert jnp.allclose(h_out, h_ref, atol=1e-4), "single-step hidden mismatch vs reference"

    # --- recurrent sequence: time loop amortized inside one pallas_call ---
    inputs_seq = jax.random.normal(k_seq, (seq_len, batch, critic_input_dim), jnp.float32)
    h0 = jnp.zeros((batch, hidden_dim), jnp.float32)   # Critic.init_hidden
    v_seq, h_seq = critic_forward_seq(inputs_seq, h0, p_slab)
    jax.block_until_ready((v_seq, h_seq))

    h = h0
    for t in range(seq_len):
        v_r, h = critic_reference(inputs_seq[t], h, params)
        assert jnp.allclose(v_seq[t], v_r, atol=1e-3), f"seq value mismatch at t={t}"
        assert jnp.allclose(h_seq[t], h, atol=1e-3), f"seq hidden mismatch at t={t}"

    print("KERNEL_OK")
</pallas_src>

<mosaic_0001>
module attributes {stable_mosaic.version = 11 : i64} {
  func.func @critic_step_kernel(%arg0: memref<8x128xf32, #tpu.memory_space<vmem>>, %arg1: memref<168x128xf32, #tpu.memory_space<vmem>>, %arg2: memref<8x128xf32, #tpu.memory_space<vmem>>) attributes {dimension_semantics = [], scalar_prefetch = 0 : i64, scratch_operands = 0 : i64, tpu.core_type = #tpu.core_type<tc>} {
    %c0 = arith.constant 0 : index
    %c0_0 = arith.constant 0 : index
    %0 = vector.load %arg0[%c0, %c0_0] : memref<8x128xf32, #tpu.memory_space<vmem>>, vector<8x128xf32>
    %1 = vector.extract_strided_slice %0 {offsets = [0, 0], sizes = [8, 32], strides = [1, 1]} : vector<8x128xf32> to vector<8x32xf32>
    %c0_1 = arith.constant 0 : index
    %c0_2 = arith.constant 0 : index
    %2 = vector.load %arg1[%c0_1, %c0_2] : memref<168x128xf32, #tpu.memory_space<vmem>>, vector<128x128xf32>
    %cst = arith.constant dense<0.000000e+00> : vector<8x128xf32>
    %3 = tpu.matmul %0, %2, %cst {dimension_numbers = #tpu.dot_dimension_numbers<[1], [0], [0], [1], [0, 0, 1, 1], [], []>, precision = #tpu.contract_precision<fp32>} : vector<8x128xf32>, vector<128x128xf32>, vector<8x128xf32> -> vector<8x128xf32>
    %4 = vector.extract_strided_slice %3 {offsets = [0, 0], sizes = [8, 32], strides = [1, 1]} : vector<8x128xf32> to vector<8x32xf32>
    %cst_3 = arith.constant 0.000000e+00 : f32
    %5 = vector.broadcast %cst_3 : f32 to vector<8x32xf32>
    %6 = arith.maximumf %4, %5 : vector<8x32xf32>
    %c128 = arith.constant 128 : index
    %c0_4 = arith.constant 0 : index
    %7 = vector.load %arg1[%c128, %c0_4] : memref<168x128xf32, #tpu.memory_space<vmem>>, vector<32x128xf32>
    %cst_5 = arith.constant dense<0.000000e+00> : vector<8x128xf32>
    %8 = tpu.matmul %6, %7, %cst_5 {dimension_numbers = #tpu.dot_dimension_numbers<[1], [0], [0], [1], [0, 0, 1, 1], [], []>, precision = #tpu.contract_precision<fp32>} : vector<8x32xf32>, vector<32x128xf32>, vector<8x128xf32> -> vector<8x128xf32>
    %c160 = arith.constant 160 : index
    %c0_6 = arith.constant 0 : index
    %9 = vector.load %arg1[%c160, %c0_6] : memref<168x128xf32, #tpu.memory_space<vmem>>, vector<1x128xf32>
    %10 = vector.broadcast %9 : vector<1x128xf32> to vector<8x128xf32>
    %11 = arith.addf %8, %10 : vector<8x128xf32>
    %12 = vector.extract_strided_slice %11 {offsets = [0, 0], sizes = [8, 32], strides = [1, 1]} : vector<8x128xf32> to vector<8x32xf32>
    %13 = vector.extract_strided_slice %3 {offsets = [0, 32], sizes = [8, 32], strides = [1, 1]} : vector<8x128xf32> to vector<8x32xf32>
    %14 = arith.addf %12, %13 : vector<8x32xf32>
    %15 = arith.negf %14 : vector<8x32xf32>
    %16 = math.exp %15 : vector<8x32xf32>
    %cst_7 = arith.constant 1.000000e+00 : f32
    %17 = vector.broadcast %cst_7 : f32 to vector<8x32xf32>
    %18 = arith.addf %17, %16 : vector<8x32xf32>
    %19 = arith.divf %17, %18 : vector<8x32xf32>
    %20 = vector.extract_strided_slice %11 {offsets = [0, 32], sizes = [8, 32], strides = [1, 1]} : vector<8x128xf32> to vector<8x32xf32>
    %21 = vector.extract_strided_slice %3 {offsets = [0, 64], sizes = [8, 32], strides = [1, 1]} : vector<8x128xf32> to vector<8x32xf32>
    %22 = arith.addf %20, %21 : vector<8x32xf32>
    %23 = arith.negf %22 : vector<8x32xf32>
    %24 = math.exp %23 : vector<8x32xf32>
    %cst_8 = arith.constant 1.000000e+00 : f32
    %25 = vector.broadcast %cst_8 : f32 to vector<8x32xf32>
    %26 = arith.addf %25, %24 : vector<8x32xf32>
    %27 = arith.divf %25, %26 : vector<8x32xf32>
    %28 = vector.extract_strided_slice %11 {offsets = [0, 64], sizes = [8, 32], strides = [1, 1]} : vector<8x128xf32> to vector<8x32xf32>
    %29 = vector.extract_strided_slice %3 {offsets = [0, 96], sizes = [8, 32], strides = [1, 1]} : vector<8x128xf32> to vector<8x32xf32>
    %30 = arith.mulf %19, %29 : vector<8x32xf32>
    %31 = arith.addf %28, %30 : vector<8x32xf32>
    %32 = math.tanh %31 : vector<8x32xf32>
    %cst_9 = arith.constant 1.000000e+00 : f32
    %33 = vector.broadcast %cst_9 : f32 to vector<8x32xf32>
    %34 = arith.subf %33, %27 : vector<8x32xf32>
    %35 = arith.mulf %34, %32 : vector<8x32xf32>
    %36 = arith.mulf %27, %1 : vector<8x32xf32>
    %37 = arith.addf %35, %36 : vector<8x32xf32>
    %c161 = arith.constant 161 : index
    %c0_10 = arith.constant 0 : index
    %38 = vector.load %arg1[%c161, %c0_10] : memref<168x128xf32, #tpu.memory_space<vmem>>, vector<1x32xf32>
    %c162 = arith.constant 162 : index
    %c0_11 = arith.constant 0 : index
    %39 = vector.load %arg1[%c162, %c0_11] : memref<168x128xf32, #tpu.memory_space<vmem>>, vector<1x1xf32>
    %40 = vector.broadcast %38 : vector<1x32xf32> to vector<8x32xf32>
    %41 = arith.mulf %37, %40 : vector<8x32xf32>
    %cst_12 = arith.constant dense<0.000000e+00> : vector<8xf32>
    %42 = vector.multi_reduction <add>, %41, %cst_12 [1] : vector<8x32xf32> to vector<8xf32>
    %43 = vector.shape_cast %42 : vector<8xf32> to vector<8x1xf32>
    %44 = vector.broadcast %39 : vector<1x1xf32> to vector<8x1xf32>
    %45 = arith.addf %43, %44 : vector<8x1xf32>
    %cst_13 = arith.constant 0.000000e+00 : f32
    %46 = vector.broadcast %cst_13 : f32 to vector<8x128xf32>
    %c0_14 = arith.constant 0 : index
    %c0_15 = arith.constant 0 : index
    %47 = vector.load %arg2[%c0_14, %c0_15] : memref<8x128xf32, #tpu.memory_space<vmem>>, vector<8x128xf32>
    tpu.vector_store %arg2[%c0_14, %c0_15], %46 {strides = array<i32>} : memref<8x128xf32, #tpu.memory_space<vmem>>, vector<8x128xf32>,
    %c0_16 = arith.constant 0 : index
    %c0_17 = arith.constant 0 : index
    %48 = vector.load %arg2[%c0_16, %c0_17] : memref<8x128xf32, #tpu.memory_space<vmem>>, vector<8x32xf32>
    tpu.vector_store %arg2[%c0_16, %c0_17], %37 {strides = array<i32>} : memref<8x128xf32, #tpu.memory_space<vmem>>, vector<8x32xf32>,
    %c0_18 = arith.constant 0 : index
    %c32 = arith.constant 32 : index
    %49 = vector.load %arg2[%c0_18, %c32] : memref<8x128xf32, #tpu.memory_space<vmem>>, vector<8x1xf32>
    tpu.vector_store %arg2[%c0_18, %c32], %45 {strides = array<i32>} : memref<8x128xf32, #tpu.memory_space<vmem>>, vector<8x1xf32>,
    return
  }
}

</mosaic_0001>

<llo_original>
// kernel: tpu_custom_call.1
$region0: #{tpu_custom_call.1}
  #allocation0 [shape = 'u32[]', space=smem, size = 0x4, offset = 0x4, fixed_abs, tag = 'smem constant byte address 0x4 - core index']
  #allocation1 [shape = 'u32[72,128]{1,0:T(1,128)}', space=vmem, size = 0x9000, scoped, tag = 'internal scratch']
  %s0 = inlined_call_operand.hbm [shape: f32[8,128], index: 0, kind: input, shape index: {}]
  %s1 = inlined_call_operand.hbm [shape: f32[168,128], index: 1, kind: input, shape index: {}]
  %s2 = inlined_call_operand.hbm [shape: f32[8,128], index: 2, kind: output, shape index: {}]
  %s3 = sld [smem:[#allocation0]]
  $region26: #{tpu_custom_call.1} parent=0
    _
  %s5 = ssub.s32 1, %s3
  %s6 = scalar_select 0, %s5, %s3
  $region1: #{tpu_custom_call.1} parent=0
    #allocation2 [shape = 'u8[4096]{0}', space=vmem, size = 0x1000, scoped, tag = 'input window, operand 0, single buffered']
    #allocation3 [shape = 's32[1]{0}', space=sflag, size = 0x4, scoped, tag = 'scoped memory for tpu_custom_call.1']
    #allocation4 [shape = 's32[1]{0}', space=sflag, size = 0x4, scoped, tag = 'scoped memory for tpu_custom_call.1']
    #allocation5 [shape = 'u8[86016]{0}', space=vmem, size = 0x15000, scoped, tag = 'input window, operand 1, single buffered']
    #allocation6 [shape = 's32[1]{0}', space=sflag, size = 0x4, scoped, tag = 'scoped memory for tpu_custom_call.1']
    #allocation7 [shape = 'u8[4096]{0}', space=vmem, size = 0x1000, scoped, tag = 'output window, operand 0, single buffered']
    %7 = vsyncpa [#allocation3], 0
    %8 = vsyncpa [#allocation6], 0
    %9 = vsyncpa [#allocation4], 0
    // Predicated region
    $region2: #{tpu_custom_call.1} parent=1 // pred_check
      _
    $region3: #{tpu_custom_call.1} parent=1 // pred_check_branch
      %11 = sbr.rel (0) target = $region5
    $region4: #{tpu_custom_call.1} parent=1 // pred_region
      %13 = vsyncadd [#allocation3], 0
      %s15 = sshll.u32 %s0, 4
      %s16 = int_to_ptr.hbm [resolvable:$true] %s15
      %s17 = sshll.u32 [#allocation2], 4
      %s18 = int_to_ptr.vmem [resolvable:$true] %s17
      %20 = dma.hbm_to_vmem [thread:$0]  %s16, 128, %s18, [#allocation3]
    $region5: #{tpu_custom_call.1} parent=1 // pred_fallthru
      _
    // Predicated region
    $region6: #{tpu_custom_call.1} parent=1 // pred_check
      _
    $region7: #{tpu_custom_call.1} parent=1 // pred_check_branch
      %22 = sbr.rel (0) target = $region9
    $region8: #{tpu_custom_call.1} parent=1 // pred_region
      %24 = vsyncadd [#allocation6], 0
      %s25 = sshll.u32 %s1, 4
      %s26 = int_to_ptr.hbm [resolvable:$true] %s25
      %s27 = sshll.u32 [#allocation5], 4
      %s28 = int_to_ptr.vmem [resolvable:$true] %s27
      %33 = dma.hbm_to_vmem [thread:$0]  %s26, 2688, %s28, [#allocation6], 128, 128, 8
    $region9: #{tpu_custom_call.1} parent=1 // pred_fallthru
      _
    // Predicated region
    $region10: #{tpu_custom_call.1} parent=1 // pred_check
      _
    $region11: #{tpu_custom_call.1} parent=1 // pred_check_branch
      %35 = sbr.rel (0) target = $region13
    $region12: #{tpu_custom_call.1} parent=1 // pred_region
      %37 = dma.done [#allocation3], 128
    $region13: #{tpu_custom_call.1} parent=1 // pred_fallthru
      _
    // Predicated region
    $region14: #{tpu_custom_call.1} parent=1 // pred_check
      _
    $region15: #{tpu_custom_call.1} parent=1 // pred_check_branch
      %39 = sbr.rel (0) target = $region17
    $region16: #{tpu_custom_call.1} parent=1 // pred_region
      %41 = dma.done [#allocation6], 2688
    $region17: #{tpu_custom_call.1} parent=1 // pred_fallthru
      _
    %v42 = vld [vmem:[#allocation2] sm:$0xff]
    %v43 = vld [vmem:[#allocation5] sm:$0xff]
    %v44 = vld [vmem:[#allocation5 + $0x8] sm:$0xff]
    %v45 = vld [vmem:[#allocation5 + $0x10] sm:$0xff]
    %v46 = vld [vmem:[#allocation5 + $0x18] sm:$0xff]
    %v47 = vld [vmem:[#allocation5 + $0x20] sm:$0xff]
    %v48 = vld [vmem:[#allocation5 + $0x28] sm:$0xff]
    %v49 = vld [vmem:[#allocation5 + $0x30] sm:$0xff]
    %v50 = vld [vmem:[#allocation5 + $0x38] sm:$0xff]
    %v51 = vld [vmem:[#allocation5 + $0x40] sm:$0xff]
    %v52 = vld [vmem:[#allocation5 + $0x48] sm:$0xff]
    %v53 = vld [vmem:[#allocation5 + $0x50] sm:$0xff]
    %v54 = vld [vmem:[#allocation5 + $0x58] sm:$0xff]
    %v55 = vld [vmem:[#allocation5 + $0x60] sm:$0xff]
    %v56 = vld [vmem:[#allocation5 + $0x68] sm:$0xff]
    %v57 = vld [vmem:[#allocation5 + $0x70] sm:$0xff]
    %v58 = vld [vmem:[#allocation5 + $0x78] sm:$0xff]
    %v59 = vand.u32 %v58, 4294901760
    %60 = vmatpush.msra.mxu0 %v59
    %v61 = vand.u32 %v57, 4294901760
    %62 = vmatpush.msra.mxu0 %v61
    %v63 = vand.u32 %v56, 4294901760
    %64 = vmatpush.msra.mxu0 %v63
    %v65 = vand.u32 %v55, 4294901760
    %66 = vmatpush.msra.mxu0 %v65
    %v67 = vand.u32 %v54, 4294901760
    %68 = vmatpush.msra.mxu0 %v67
    %v69 = vand.u32 %v53, 4294901760
    %70 = vmatpush.msra.mxu0 %v69
    %v71 = vand.u32 %v52, 4294901760
    %72 = vmatpush.msra.mxu0 %v71
    %v73 = vand.u32 %v51, 4294901760
    %74 = vmatpush.msra.mxu0 %v73
    %v75 = vand.u32 %v50, 4294901760
    %76 = vmatpush.msra.mxu0 %v75
    %v77 = vand.u32 %v49, 4294901760
    %78 = vmatpush.msra.mxu0 %v77
    %v79 = vand.u32 %v48, 4294901760
    %80 = vmatpush.msra.mxu0 %v79
    %v81 = vand.u32 %v47, 4294901760
    %82 = vmatpush.msra.mxu0 %v81
    %v83 = vand.u32 %v46, 4294901760
    %84 = vmatpush.msra.mxu0 %v83
    %v85 = vand.u32 %v45, 4294901760
    %86 = vmatpush.msra.mxu0 %v85
    %v87 = vand.u32 %v44, 4294901760
    %88 = vmatpush.msra.mxu0 %v87
    %v89 = vand.u32 %v43, 4294901760
    %90 = vmatpush.msra.mxu0 %v89
    %v91 = vand.u32 %v42, 4294901760
    %v92 = vsub.f32 %v42, %v91
    %v93 = vand.u32 %v92, 4294901760
    %v94 = vsub.f32 %v92, %v93
    %v95 = vand.u32 %v94, 4294901760
    %96 = vmatmul.f32.gmra.mxu0 %v95
    %v97 = vpop.f32.mrf.mxu0
    %v98 = vadd.f32 0.0, %v97
    %99 = vdwg.mxu0
    %v100 = vand.u32 %v58, 4294901760
    %v101 = vsub.f32 %v58, %v100
    %v102 = vand.u32 %v101, 4294901760
    %v103 = vsub.f32 %v101, %v102
    %v104 = vand.u32 %v103, 4294901760
    %105 = vmatpush.msra.mxu0 %v104
    %v106 = vand.u32 %v57, 4294901760
    %v107 = vsub.f32 %v57, %v106
    %v108 = vand.u32 %v107, 4294901760
    %v109 = vsub.f32 %v107, %v108
    %v110 = vand.u32 %v109, 4294901760
    %111 = vmatpush.msra.mxu0 %v110
    %v112 = vand.u32 %v56, 4294901760
    %v113 = vsub.f32 %v56, %v112
    %v114 = vand.u32 %v113, 4294901760
    %v115 = vsub.f32 %v113, %v114
    %v116 = vand.u32 %v115, 4294901760
    %117 = vmatpush.msra.mxu0 %v116
    %v118 = vand.u32 %v55, 4294901760
    %v119 = vsub.f32 %v55, %v118
    %v120 = vand.u32 %v119, 4294901760
    %v121 = vsub.f32 %v119, %v120
    %v122 = vand.u32 %v121, 4294901760
    %123 = vmatpush.msra.mxu0 %v122
    %v124 = vand.u32 %v54, 4294901760
    %v125 = vsub.f32 %v54, %v124
    %v126 = vand.u32 %v125, 4294901760
    %v127 = vsub.f32 %v125, %v126
    %v128 = vand.u32 %v127, 4294901760
    %129 = vmatpush.msra.mxu0 %v128
    %v130 = vand.u32 %v53, 4294901760
    %v131 = vsub.f32 %v53, %v130
    %v132 = vand.u32 %v131, 4294901760
    %v133 = vsub.f32 %v131, %v132
    %v134 = vand.u32 %v133, 4294901760
    %135 = vmatpush.msra.mxu0 %v134
    %v136 = vand.u32 %v52, 4294901760
    %v137 = vsub.f32 %v52, %v136
    %v138 = vand.u32 %v137, 4294901760
    %v139 = vsub.f32 %v137, %v138
    %v140 = vand.u32 %v139, 4294901760
    %141 = vmatpush.msra.mxu0 %v140
    %v142 = vand.u32 %v51, 4294901760
    %v143 = vsub.f32 %v51, %v142
    %v144 = vand.u32 %v143, 4294901760
    %v145 = vsub.f32 %v143, %v144
    %v146 = vand.u32 %v145, 4294901760
    %147 = vmatpush.msra.mxu0 %v146
    %v148 = vand.u32 %v50, 4294901760
    %v149 = vsub.f32 %v50, %v148
    %v150 = vand.u32 %v149, 4294901760
    %v151 = vsub.f32 %v149, %v150
    %v152 = vand.u32 %v151, 4294901760
    %153 = vmatpush.msra.mxu0 %v152
    %v154 = vand.u32 %v49, 4294901760
    %v155 = vsub.f32 %v49, %v154
    %v156 = vand.u32 %v155, 4294901760
    %v157 = vsub.f32 %v155, %v156
    %v158 = vand.u32 %v157, 4294901760
    %159 = vmatpush.msra.mxu0 %v158
    %v160 = vand.u32 %v48, 4294901760
    %v161 = vsub.f32 %v48, %v160
    %v162 = vand.u32 %v161, 4294901760
    %v163 = vsub.f32 %v161, %v162
    %v164 = vand.u32 %v163, 4294901760
    %165 = vmatpush.msra.mxu0 %v164
    %v166 = vand.u32 %v47, 4294901760
    %v167 = vsub.f32 %v47, %v166
    %v168 = vand.u32 %v167, 4294901760
    %v169 = vsub.f32 %v167, %v168
    %v170 = vand.u32 %v169, 4294901760
    %171 = vmatpush.msra.mxu0 %v170
    %v172 = vand.u32 %v46, 4294901760
    %v173 = vsub.f32 %v46, %v172
    %v174 = vand.u32 %v173, 4294901760
    %v175 = vsub.f32 %v173, %v174
    %v176 = vand.u32 %v175, 4294901760
    %177 = vmatpush.msra.mxu0 %v176
    %v178 = vand.u32 %v45, 4294901760
    %v179 = vsub.f32 %v45, %v178
    %v180 = vand.u32 %v179, 4294901760
    %v181 = vsub.f32 %v179, %v180
    %v182 = vand.u32 %v181, 4294901760
    %183 = vmatpush.msra.mxu0 %v182
    %v184 = vand.u32 %v44, 4294901760
    %v185 = vsub.f32 %v44, %v184
    %v186 = vand.u32 %v185, 4294901760
    %v187 = vsub.f32 %v185, %v186
    %v188 = vand.u32 %v187, 4294901760
    %189 = vmatpush.msra.mxu0 %v188
    %v190 = vand.u32 %v43, 4294901760
    %v191 = vsub.f32 %v43, %v190
    %v192 = vand.u32 %v191, 4294901760
    %v193 = vsub.f32 %v191, %v192
    %v194 = vand.u32 %v193, 4294901760
    %195 = vmatpush.msra.mxu0 %v194
    %v196 = vand.u32 %v42, 4294901760
    %197 = vmatmul.f32.gmra.mxu0 %v196
    %v198 = vpop.f32.mrf.mxu0
    %v199 = vadd.f32 %v98, %v198
    %200 = vdwg.mxu0
    %v201 = vand.u32 %v58, 4294901760
    %v202 = vsub.f32 %v58, %v201
    %203 = vmatpush.msra.mxu0 %v202
    %v204 = vand.u32 %v57, 4294901760
    %v205 = vsub.f32 %v57, %v204
    %206 = vmatpush.msra.mxu0 %v205
    %v207 = vand.u32 %v56, 4294901760
    %v208 = vsub.f32 %v56, %v207
    %209 = vmatpush.msra.mxu0 %v208
    %v210 = vand.u32 %v55, 4294901760
    %v211 = vsub.f32 %v55, %v210
    %212 = vmatpush.msra.mxu0 %v211
    %v213 = vand.u32 %v54, 4294901760
    %v214 = vsub.f32 %v54, %v213
    %215 = vmatpush.msra.mxu0 %v214
    %v216 = vand.u32 %v53, 4294901760
    %v217 = vsub.f32 %v53, %v216
    %218 = vmatpush.msra.mxu0 %v217
    %v219 = vand.u32 %v52, 4294901760
    %v220 = vsub.f32 %v52, %v219
    %221 = vmatpush.msra.mxu0 %v220
    %v222 = vand.u32 %v51, 4294901760
    %v223 = vsub.f32 %v51, %v222
    %224 = vmatpush.msra.mxu0 %v223
    %v225 = vand.u32 %v50, 4294901760
    %v226 = vsub.f32 %v50, %v225
    %227 = vmatpush.msra.mxu0 %v226
    %v228 = vand.u32 %v49, 4294901760
    %v229 = vsub.f32 %v49, %v228
    %230 = vmatpush.msra.mxu0 %v229
    %v231 = vand.u32 %v48, 4294901760
    %v232 = vsub.f32 %v48, %v231
    %233 = vmatpush.msra.mxu0 %v232
    %v234 = vand.u32 %v47, 4294901760
    %v235 = vsub.f32 %v47, %v234
    %236 = vmatpush.msra.mxu0 %v235
    %v237 = vand.u32 %v46, 4294901760
    %v238 = vsub.f32 %v46, %v237
    %239 = vmatpush.msra.mxu0 %v238
    %v240 = vand.u32 %v45, 4294901760
    %v241 = vsub.f32 %v45, %v240
    %242 = vmatpush.msra.mxu0 %v241
    %v243 = vand.u32 %v44, 4294901760
    %v244 = vsub.f32 %v44, %v243
    %245 = vmatpush.msra.mxu0 %v244
    %v246 = vand.u32 %v43, 4294901760
    %v247 = vsub.f32 %v43, %v246
    %248 = vmatpush.msra.mxu0 %v247
    %v249 = vand.u32 %v42, 4294901760
    %v250 = vsub.f32 %v42, %v249
    %251 = vmatmul.f32.gmra.mxu0 %v250
    %v252 = vpop.f32.mrf.mxu0
    %v253 = vadd.f32 %v199, %v252
    %254 = vdwg.mxu0
    %v255 = vand.u32 %v58, 4294901760
    %256 = vmatpush.msra.mxu0 %v255
    %v257 = vand.u32 %v57, 4294901760
    %258 = vmatpush.msra.mxu0 %v257
    %v259 = vand.u32 %v56, 4294901760
    %260 = vmatpush.msra.mxu0 %v259
    %v261 = vand.u32 %v55, 4294901760
    %262 = vmatpush.msra.mxu0 %v261
    %v263 = vand.u32 %v54, 4294901760
    %264 = vmatpush.msra.mxu0 %v263
    %v265 = vand.u32 %v53, 4294901760
    %266 = vmatpush.msra.mxu0 %v265
    %v267 = vand.u32 %v52, 4294901760
    %268 = vmatpush.msra.mxu0 %v267
    %v269 = vand.u32 %v51, 4294901760
    %270 = vmatpush.msra.mxu0 %v269
    %v271 = vand.u32 %v50, 4294901760
    %272 = vmatpush.msra.mxu0 %v271
    %v273 = vand.u32 %v49, 4294901760
    %274 = vmatpush.msra.mxu0 %v273
    %v275 = vand.u32 %v48, 4294901760
    %276 = vmatpush.msra.mxu0 %v275
    %v277 = vand.u32 %v47, 4294901760
    %278 = vmatpush.msra.mxu0 %v277
    %v279 = vand.u32 %v46, 4294901760
    %280 = vmatpush.msra.mxu0 %v279
    %v281 = vand.u32 %v45, 4294901760
    %282 = vmatpush.msra.mxu0 %v281
    %v283 = vand.u32 %v44, 4294901760
    %284 = vmatpush.msra.mxu0 %v283
    %v285 = vand.u32 %v43, 4294901760
    %286 = vmatpush.msra.mxu0 %v285
    %v287 = vand.u32 %v42, 4294901760
    %v288 = vsub.f32 %v42, %v287
    %v289 = vand.u32 %v288, 4294901760
    %290 = vmatmul.f32.gmra.mxu0 %v289
    %v291 = vpop.f32.mrf.mxu0
    %v292 = vadd.f32 %v253, %v291
    %293 = vdwg.mxu0
    %v294 = vand.u32 %v58, 4294901760
    %v295 = vsub.f32 %v58, %v294
    %v296 = vand.u32 %v295, 4294901760
    %297 = vmatpush.msra.mxu0 %v296
    %v298 = vand.u32 %v57, 4294901760
    %v299 = vsub.f32 %v57, %v298
    %v300 = vand.u32 %v299, 4294901760
    %301 = vmatpush.msra.mxu0 %v300
    %v302 = vand.u32 %v56, 4294901760
    %v303 = vsub.f32 %v56, %v302
    %v304 = vand.u32 %v303, 4294901760
    %305 = vmatpush.msra.mxu0 %v304
    %v306 = vand.u32 %v55, 4294901760
    %v307 = vsub.f32 %v55, %v306
    %v308 = vand.u32 %v307, 4294901760
    %309 = vmatpush.msra.mxu0 %v308
    %v310 = vand.u32 %v54, 4294901760
    %v311 = vsub.f32 %v54, %v310
    %v312 = vand.u32 %v311, 4294901760
    %313 = vmatpush.msra.mxu0 %v312
    %v314 = vand.u32 %v53, 4294901760
    %v315 = vsub.f32 %v53, %v314
    %v316 = vand.u32 %v315, 4294901760
    %317 = vmatpush.msra.mxu0 %v316
    %v318 = vand.u32 %v52, 4294901760
    %v319 = vsub.f32 %v52, %v318
    %v320 = vand.u32 %v319, 4294901760
    %321 = vmatpush.msra.mxu0 %v320
    %v322 = vand.u32 %v51, 4294901760
    %v323 = vsub.f32 %v51, %v322
    %v324 = vand.u32 %v323, 4294901760
    %325 = vmatpush.msra.mxu0 %v324
    %v326 = vand.u32 %v50, 4294901760
    %v327 = vsub.f32 %v50, %v326
    %v328 = vand.u32 %v327, 4294901760
    %329 = vmatpush.msra.mxu0 %v328
    %v330 = vand.u32 %v49, 4294901760
    %v331 = vsub.f32 %v49, %v330
    %v332 = vand.u32 %v331, 4294901760
    %333 = vmatpush.msra.mxu0 %v332
    %v334 = vand.u32 %v48, 4294901760
    %v335 = vsub.f32 %v48, %v334
    %v336 = vand.u32 %v335, 4294901760
    %337 = vmatpush.msra.mxu0 %v336
    %v338 = vand.u32 %v47, 4294901760
    %v339 = vsub.f32 %v47, %v338
    %v340 = vand.u32 %v339, 4294901760
    %341 = vmatpush.msra.mxu0 %v340
    %v342 = vand.u32 %v46, 4294901760
    %v343 = vsub.f32 %v46, %v342
    %v344 = vand.u32 %v343, 4294901760
    %345 = vmatpush.msra.mxu0 %v344
    %v346 = vand.u32 %v45, 4294901760
    %v347 = vsub.f32 %v45, %v346
    %v348 = vand.u32 %v347, 4294901760
    %349 = vmatpush.msra.mxu0 %v348
    %v350 = vand.u32 %v44, 4294901760
    %v351 = vsub.f32 %v44, %v350
    %v352 = vand.u32 %v351, 4294901760
    %353 = vmatpush.msra.mxu0 %v352
    %v354 = vand.u32 %v43, 4294901760
    %v355 = vsub.f32 %v43, %v354
    %v356 = vand.u32 %v355, 4294901760
    %357 = vmatpush.msra.mxu0 %v356
    %v358 = vand.u32 %v42, 4294901760
    %359 = vmatmul.f32.gmra.mxu0 %v358
    %v360 = vpop.f32.mrf.mxu0
    %v361 = vadd.f32 %v292, %v360
    %362 = vdwg.mxu0
    %v363 = vand.u32 %v58, 4294901760
    %364 = vmatpush.msra.mxu0 %v363
    %v365 = vand.u32 %v57, 4294901760
    %366 = vmatpush.msra.mxu0 %v365
    %v367 = vand.u32 %v56, 4294901760
    %368 = vmatpush.msra.mxu0 %v367
    %v369 = vand.u32 %v55, 4294901760
    %370 = vmatpush.msra.mxu0 %v369
    %v371 = vand.u32 %v54, 4294901760
    %372 = vmatpush.msra.mxu0 %v371
    %v373 = vand.u32 %v53, 4294901760
    %374 = vmatpush.msra.mxu0 %v373
    %v375 = vand.u32 %v52, 4294901760
    %376 = vmatpush.msra.mxu0 %v375
    %v377 = vand.u32 %v51, 4294901760
    %378 = vmatpush.msra.mxu0 %v377
    %v379 = vand.u32 %v50, 4294901760
    %380 = vmatpush.msra.mxu0 %v379
    %v381 = vand.u32 %v49, 4294901760
    %382 = vmatpush.msra.mxu0 %v381
    %v383 = vand.u32 %v48, 4294901760
    %384 = vmatpush.msra.mxu0 %v383
    %v385 = vand.u32 %v47, 4294901760
    %386 = vmatpush.msra.mxu0 %v385
    %v387 = vand.u32 %v46, 4294901760
    %388 = vmatpush.msra.mxu0 %v387
    %v389 = vand.u32 %v45, 4294901760
    %390 = vmatpush.msra.mxu0 %v389
    %v391 = vand.u32 %v44, 4294901760
    %392 = vmatpush.msra.mxu0 %v391
    %v393 = vand.u32 %v43, 4294901760
    %394 = vmatpush.msra.mxu0 %v393
    %v395 = vand.u32 %v42, 4294901760
    %396 = vmatmul.f32.gmra.mxu0 %v395
    %v397 = vpop.f32.mrf.mxu0
    %v398 = vadd.f32 %v361, %v397
    %399 = vdwg.mxu0
    %v400 = vmax.f32 %v398, 0.0
    %v401 = vld [vmem:[#allocation5 + $0x80] sm:$0xff]
    %v402 = vld [vmem:[#allocation5 + $0x88] sm:$0xff]
    %v403 = vld [vmem:[#allocation5 + $0x90] sm:$0xff]
    %v404 = vld [vmem:[#allocation5 + $0x98] sm:$0xff]
    %v405 = vld [vmem:[#allocation5 + $0xa0] sm:$0x1]
    %v406 = vperm.slane %v405, 0
    %vm407 = vcmask 261120
    %v409 = vsel %vm407, %v400, 0
    %411 = vmatpush.msra.mxu0 0.0
    %412 = vmatpush.msra.mxu0 0.0
    %413 = vmatpush.msra.mxu0 0.0
    %414 = vmatpush.msra.mxu0 0.0
    %415 = vmatpush.msra.mxu0 0.0
    %416 = vmatpush.msra.mxu0 0.0
    %417 = vmatpush.msra.mxu0 0.0
    %418 = vmatpush.msra.mxu0 0.0
    %419 = vmatpush.msra.mxu0 0.0
    %420 = vmatpush.msra.mxu0 0.0
    %421 = vmatpush.msra.mxu0 0.0
    %422 = vmatpush.msra.mxu0 0.0
    %v423 = vand.u32 %v404, 4294901760
    %424 = vmatpush.msra.mxu0 %v423
    %v425 = vand.u32 %v403, 4294901760
    %426 = vmatpush.msra.mxu0 %v425
    %v427 = vand.u32 %v402, 4294901760
    %428 = vmatpush.msra.mxu0 %v427
    %v429 = vand.u32 %v401, 4294901760
    %430 = vmatpush.msra.mxu0 %v429
    %v431 = vand.u32 %v409, 4294901760
    %v432 = vsub.f32 %v409, %v431
    %v433 = vand.u32 %v432, 4294901760
    %v434 = vsub.f32 %v432, %v433
    %v435 = vand.u32 %v434, 4294901760
    %436 = vmatmul.f32.gmra.mxu0 %v435
    %v437 = vpop.f32.mrf.mxu0
    %v438 = vadd.f32 %v406, %v437
    %439 = vdwg.mxu0
    %440 = vmatpush.msra.mxu0 0.0
    %441 = vmatpush.msra.mxu0 0.0
    %442 = vmatpush.msra.mxu0 0.0
    %443 = vmatpush.msra.mxu0 0.0
    %444 = vmatpush.msra.mxu0 0.0
    %445 = vmatpush.msra.mxu0 0.0
    %446 = vmatpush.msra.mxu0 0.0
    %447 = vmatpush.msra.mxu0 0.0
    %448 = vmatpush.msra.mxu0 0.0
    %449 = vmatpush.msra.mxu0 0.0
    %450 = vmatpush.msra.mxu0 0.0
    %451 = vmatpush.msra.mxu0 0.0
    %v452 = vand.u32 %v404, 4294901760
    %v453 = vsub.f32 %v404, %v452
    %v454 = vand.u32 %v453, 4294901760
    %v455 = vsub.f32 %v453, %v454
    %v456 = vand.u32 %v455, 4294901760
    %457 = vmatpush.msra.mxu0 %v456
    %v458 = vand.u32 %v403, 4294901760
    %v459 = vsub.f32 %v403, %v458
    %v460 = vand.u32 %v459, 4294901760
    %v461 = vsub.f32 %v459, %v460
    %v462 = vand.u32 %v461, 4294901760
    %463 = vmatpush.msra.mxu0 %v462
    %v464 = vand.u32 %v402, 4294901760
    %v465 = vsub.f32 %v402, %v464
    %v466 = vand.u32 %v465, 4294901760
    %v467 = vsub.f32 %v465, %v466
    %v468 = vand.u32 %v467, 4294901760
    %469 = vmatpush.msra.mxu0 %v468
    %v470 = vand.u32 %v401, 4294901760
    %v471 = vsub.f32 %v401, %v470
    %v472 = vand.u32 %v471, 4294901760
    %v473 = vsub.f32 %v471, %v472
    %v474 = vand.u32 %v473, 4294901760
    %475 = vmatpush.msra.mxu0 %v474
    %v476 = vand.u32 %v409, 4294901760
    %477 = vmatmul.f32.gmra.mxu0 %v476
    %v478 = vpop.f32.mrf.mxu0
    %v479 = vadd.f32 %v438, %v478
    %480 = vdwg.mxu0
    %481 = vmatpush.msra.mxu0 0.0
    %482 = vmatpush.msra.mxu0 0.0
    %483 = vmatpush.msra.mxu0 0.0
    %484 = vmatpush.msra.mxu0 0.0
    %485 = vmatpush.msra.mxu0 0.0
    %486 = vmatpush.msra.mxu0 0.0
    %487 = vmatpush.msra.mxu0 0.0
    %488 = vmatpush.msra.mxu0 0.0
    %489 = vmatpush.msra.mxu0 0.0
    %490 = vmatpush.msra.mxu0 0.0
    %491 = vmatpush.msra.mxu0 0.0
    %492 = vmatpush.msra.mxu0 0.0
    %v493 = vand.u32 %v404, 4294901760
    %v494 = vsub.f32 %v404, %v493
    %495 = vmatpush.msra.mxu0 %v494
    %v496 = vand.u32 %v403, 4294901760
    %v497 = vsub.f32 %v403, %v496
    %498 = vmatpush.msra.mxu0 %v497
    %v499 = vand.u32 %v402, 4294901760
    %v500 = vsub.f32 %v402, %v499
    %501 = vmatpush.msra.mxu0 %v500
    %v502 = vand.u32 %v401, 4294901760
    %v503 = vsub.f32 %v401, %v502
    %504 = vmatpush.msra.mxu0 %v503
    %v505 = vand.u32 %v409, 4294901760
    %v506 = vsub.f32 %v409, %v505
    %507 = vmatmul.f32.gmra.mxu0 %v506
    %v508 = vpop.f32.mrf.mxu0
    %v509 = vadd.f32 %v479, %v508
    %510 = vdwg.mxu0
    %511 = vmatpush.msra.mxu0 0.0
    %512 = vmatpush.msra.mxu0 0.0
    %513 = vmatpush.msra.mxu0 0.0
    %514 = vmatpush.msra.mxu0 0.0
    %515 = vmatpush.msra.mxu0 0.0
    %516 = vmatpush.msra.mxu0 0.0
    %517 = vmatpush.msra.mxu0 0.0
    %518 = vmatpush.msra.mxu0 0.0
    %519 = vmatpush.msra.mxu0 0.0
    %520 = vmatpush.msra.mxu0 0.0
    %521 = vmatpush.msra.mxu0 0.0
    %522 = vmatpush.msra.mxu0 0.0
    %v523 = vand.u32 %v404, 4294901760
    %524 = vmatpush.msra.mxu0 %v523
    %v525 = vand.u32 %v403, 4294901760
    %526 = vmatpush.msra.mxu0 %v525
    %v527 = vand.u32 %v402, 4294901760
    %528 = vmatpush.msra.mxu0 %v527
    %v529 = vand.u32 %v401, 4294901760
    %530 = vmatpush.msra.mxu0 %v529
    %v531 = vand.u32 %v409, 4294901760
    %v532 = vsub.f32 %v409, %v531
    %v533 = vand.u32 %v532, 4294901760
    %534 = vmatmul.f32.gmra.mxu0 %v533
    %v535 = vpop.f32.mrf.mxu0
    %v536 = vadd.f32 %v509, %v535
    %537 = vdwg.mxu0
    %538 = vmatpush.msra.mxu0 0.0
    %539 = vmatpush.msra.mxu0 0.0
    %540 = vmatpush.msra.mxu0 0.0
    %541 = vmatpush.msra.mxu0 0.0
    %542 = vmatpush.msra.mxu0 0.0
    %543 = vmatpush.msra.mxu0 0.0
    %544 = vmatpush.msra.mxu0 0.0
    %545 = vmatpush.msra.mxu0 0.0
    %546 = vmatpush.msra.mxu0 0.0
    %547 = vmatpush.msra.mxu0 0.0
    %548 = vmatpush.msra.mxu0 0.0
    %549 = vmatpush.msra.mxu0 0.0
    %v550 = vand.u32 %v404, 4294901760
    %v551 = vsub.f32 %v404, %v550
    %v552 = vand.u32 %v551, 4294901760
    %553 = vmatpush.msra.mxu0 %v552
    %v554 = vand.u32 %v403, 4294901760
    %v555 = vsub.f32 %v403, %v554
    %v556 = vand.u32 %v555, 4294901760
    %557 = vmatpush.msra.mxu0 %v556
    %v558 = vand.u32 %v402, 4294901760
    %v559 = vsub.f32 %v402, %v558
    %v560 = vand.u32 %v559, 4294901760
    %561 = vmatpush.msra.mxu0 %v560
    %v562 = vand.u32 %v401, 4294901760
    %v563 = vsub.f32 %v401, %v562
    %v564 = vand.u32 %v563, 4294901760
    %565 = vmatpush.msra.mxu0 %v564
    %v566 = vand.u32 %v409, 4294901760
    %567 = vmatmul.f32.gmra.mxu0 %v566
    %v568 = vpop.f32.mrf.mxu0
    %v569 = vadd.f32 %v536, %v568
    %570 = vdwg.mxu0
    %571 = vmatpush.msra.mxu0 0.0
    %572 = vmatpush.msra.mxu0 0.0
    %573 = vmatpush.msra.mxu0 0.0
    %574 = vmatpush.msra.mxu0 0.0
    %575 = vmatpush.msra.mxu0 0.0
    %576 = vmatpush.msra.mxu0 0.0
    %577 = vmatpush.msra.mxu0 0.0
    %578 = vmatpush.msra.mxu0 0.0
    %579 = vmatpush.msra.mxu0 0.0
    %580 = vmatpush.msra.mxu0 0.0
    %581 = vmatpush.msra.mxu0 0.0
    %582 = vmatpush.msra.mxu0 0.0
    %v583 = vand.u32 %v404, 4294901760
    %584 = vmatpush.msra.mxu0 %v583
    %v585 = vand.u32 %v403, 4294901760
    %586 = vmatpush.msra.mxu0 %v585
    %v587 = vand.u32 %v402, 4294901760
    %588 = vmatpush.msra.mxu0 %v587
    %v589 = vand.u32 %v401, 4294901760
    %590 = vmatpush.msra.mxu0 %v589
    %v591 = vand.u32 %v409, 4294901760
    %592 = vmatmul.f32.gmra.mxu0 %v591
    %v593 = vpop.f32.mrf.mxu0
    %v594 = vadd.f32 %v569, %v593
    %595 = vdwg.mxu0
    %597 = vrot.lane.b32.xlu0 %v398, 96
    %v598 = vpop.permute.xlu0 %597
    %v600 = vadd.f32 %v594, %v598
    %v601 = vxor.u32 %v600, 2147483648
    %v602 = vmul.f32 %v601, 1.442695
    %v603 = vpow.pop %v602
    %v604 = vadd.f32 %v603, 1.0
    %v605 = vrcp.pop %v604
    %v606 = vmul.f32 %v604, %v605
    %v607 = vsub.f32 1.0, %v606
    %v608 = vmul.f32 %v605, %v607
    %v609 = vadd.f32 %v605, %v608
    %vm610 = vweird.f32 %v604
    %vm611 = vweird.f32 %v605
    %vm612 = vmor %vm610, %vm611
    %v613 = vsel %vm612, %v605, %v609
    %v614 = vand.u32 2147483647, %v604
    %vm615 = vcmp.eq.f32.partialorder %v614, 8.507059e+37
    %v616 = vand.u32 %v604, 2147483648
    %v617 = vor.u32 1.1754944e-38, %v616
    %v618 = vsel %vm615, %v617, %v613
    %v619 = vmul.f32 1.0, %v618
    %620 = vrot.lane.b32.xlu0 %v398, 32
    %v621 = vpop.permute.xlu0 %620
    %v623 = vmul.f32 %v619, %v621
    %625 = vrot.lane.b32.xlu0 %v623, 64
    %v626 = vpop.permute.xlu0 %625
    %v628 = vadd.f32 %v594, %v626
    %v629 = vtanh.pop %v628
    %v630 = vsub.f32 1.0, %v619
    %632 = vrot.lane.b32.xlu0 %v629, 96
    %v633 = vpop.permute.xlu0 %632
    %v635 = vmul.f32 %v630, %v633
    %637 = vrot.lane.b32.xlu0 %v42, 32
    %v638 = vpop.permute.xlu0 %637
    %v640 = vmul.f32 %v619, %v638
    %v641 = vadd.f32 %v635, %v640
    %v642 = vld [vmem:[#allocation5 + $0xa1] sm:$0x1]
    %v643 = vld [vmem:[#allocation5 + $0xa2] sm:$0x1]
    %v644 = vperm.slane %v642, 0
    %646 = vrot.lane.b32.xlu0 %v644, 32
    %v647 = vpop.permute.xlu0 %646
    %v649 = vmul.f32 %v641, %v647
    %651 = vrot.lane.b32.xlu0 %v649, 96
    %v652 = vpop.permute.xlu0 %651
    %v654 = vsel %vm407, %v652, 0.0
    %655 = vadd.xlane.f32.xlu0 %v654
    %v656 = vpop.xlane.xlu0 %655
    %v657 = vperm.slane %v643, 0
    %v658 = vadd.f32 %v656, %v657
    %659 = vst [vmem:[#allocation7] sm:$0xff] 0.0
    %661 = vrot.lane.b32.xlu0 %v641, 96
    %v662 = vpop.permute.xlu0 %661
    %664 = vst.msk [vmem:[#allocation7] sm:$0xff] %vm407, %v662
    %666 = vrot.lane.b32.xlu0 %v658, 32
    %v667 = vpop.permute.xlu0 %666
    %vm669 = vcmask 269568
    %670 = vst.msk [vmem:[#allocation7] sm:$0xff] %vm669, %v667
    // Predicated region
    $region18: #{tpu_custom_call.1} parent=1 // pred_check
      _
    $region19: #{tpu_custom_call.1} parent=1 // pred_check_branch
      %672 = sbr.rel (0) target = $region21
    $region20: #{tpu_custom_call.1} parent=1 // pred_region
      %674 = vsyncadd [#allocation4], 0
      %s676 = sshll.u32 [#allocation7], 4
      %s677 = int_to_ptr.vmem [resolvable:$true] %s676
      %s678 = sshll.u32 %s2, 4
      %s679 = int_to_ptr.hbm [resolvable:$true] %s678
      %681 = dma.vmem_to_hbm [thread:$0]  %s677, 128, %s679, [#allocation4]
    $region21: #{tpu_custom_call.1} parent=1 // pred_fallthru
      _
    // Predicated region
    $region22: #{tpu_custom_call.1} parent=1 // pred_check
      _
    $region23: #{tpu_custom_call.1} parent=1 // pred_check_branch
      %683 = sbr.rel (0) target = $region25
    $region24: #{tpu_custom_call.1} parent=1 // pred_region
      %685 = dma.done [#allocation4], 128
    $region25: #{tpu_custom_call.1} parent=1 // pred_fallthru
      _
    %686 = vsyncpa [#allocation3], 1
    %687 = vsyncpa [#allocation6], 1
    %688 = vsyncpa [#allocation4], 1

</llo_original>
